<compile_context>
chip_gen: v7x
topology: tpu7x:2x2x1
jax: 0.10.0
libtpu: 0.0.40
codegen_flags: <defaults>
</compile_context>

<pallas_src>
import jax
import jax.numpy as jnp
from jax.experimental import pallas as pl
from jax.experimental.pallas import tpu as pltpu


# --------------------------------------------------------------------------
# In-kernel 3x3 same-padded conv with dx-tap fusion (K = 3*Cin per matmul).
# --------------------------------------------------------------------------
def _conv3x3_taps(v, pad_ref, w, b, *, relu):
    # v: (H, W, Cin) f32 value (unpadded image held in VMEM/registers)
    # pad_ref: (H+2, W+2, Cin) VMEM scratch (zero-padded copy built here)
    # w: (3, 3*Cin, Cout) value  — rows ordered (dx, cin) per dy
    # b: (1, Cout) value
    # returns (H*W, Cout) f32
    H, W, Cin = v.shape
    Cout = w.shape[-1]

    # Zero-pad in VMEM (no wrapper-side jnp.pad / extra HBM copy).
    pad_ref[...] = jnp.zeros_like(pad_ref)
    pad_ref[1:H + 1, 1:W + 1, :] = v

    # Read the three dx-shifted planes ONCE and fuse them into the lane axis;
    # dy shifts are free leading-dim slices of the resulting value.
    taps = jnp.concatenate(
        [pad_ref[:, 0:W, :], pad_ref[:, 1:W + 1, :], pad_ref[:, 2:W + 2, :]],
        axis=-1)                                        # (H+2, W, 3*Cin)

    acc = jnp.zeros((H * W, Cout), jnp.float32)
    for dy in range(3):                                 # 3 matmuls, K = 3*Cin
        p = taps[dy:dy + H].reshape(H * W, 3 * Cin)
        acc = acc + jnp.dot(p, w[dy], preferred_element_type=jnp.float32)
    acc = acc + b
    if relu:
        acc = jnp.maximum(acc, 0.0)
    return acc


# --------------------------------------------------------------------------
# Kernel A: layer 0 (conv 3->64, single K=27 matmul on wrapper im2col patch)
#           + layer 1 (ReLU) for BOTH X and target, + MSE partial @ i == 1.
# One grid step = one (X, target) image pair.
# --------------------------------------------------------------------------
def _conv1_relu_mse_kernel(xp_ref, tp_ref, w_ref, b_ref,
                           xo_ref, to_ref, l_ref):
    w = w_ref[...]                                      # (27, 64)
    b = b_ref[...]                                      # (1, 64)
    xa = jnp.maximum(
        jnp.dot(xp_ref[...], w, preferred_element_type=jnp.float32) + b, 0.0)
    ta = jnp.maximum(
        jnp.dot(tp_ref[...], w, preferred_element_type=jnp.float32) + b, 0.0)
    xo_ref[...] = xa.astype(xo_ref.dtype)
    to_ref[...] = ta.astype(to_ref.dtype)
    d = xa - ta
    # broadcast the scalar partial sum into this image's (1, 1) output tile
    l_ref[...] = jnp.zeros_like(l_ref) + jnp.sum(d * d)


# --------------------------------------------------------------------------
# Kernel B: layers 2..5 for BOTH X and target + MSE partial @ i == 3, fused:
#   conv 64->64 (+ReLU)  ->  squared-diff partial  ->  maxpool 2x2
#   ->  conv 64->128 (no ReLU).
# Intermediate activations stay in VMEM — no HBM round trips between layers.
# --------------------------------------------------------------------------
def _conv2_pool_conv3_kernel(x_ref, t_ref, w2_ref, b2_ref, w3_ref, b3_ref,
                             xo_ref, to_ref, l_ref,
                             pad2_ref, pad3_ref, hm_ref):
    H, W, _ = x_ref.shape
    C2 = w2_ref.shape[-1]                               # 64
    Ho, Wo = H // 2, W // 2
    w2 = w2_ref[...]
    b2 = b2_ref[...]
    w3 = w3_ref[...]
    b3 = b3_ref[...]

    def stage(v):
        # layers 2+3: conv 64->64 + ReLU (3 matmuls of K=192)
        a2 = _conv3x3_taps(v, pad2_ref, w2, b2, relu=True)      # (H*W, C2)
        # layer 4: maxpool 2x2 — H pairs via a free leading-dim split,
        # W pairs via stride-2 sublane reads from a small VMEM scratch.
        a2h = a2.reshape(Ho, 2, W, C2)
        hm_ref[...] = jnp.maximum(a2h[:, 0, :, :], a2h[:, 1, :, :])
        pooled = jnp.maximum(hm_ref[:, pl.ds(0, Wo, 2), :],
                             hm_ref[:, pl.ds(1, Wo, 2), :])      # (Ho, Wo, C2)
        # layer 5: conv 64->128, no ReLU
        a5 = _conv3x3_taps(pooled, pad3_ref, w3, b3, relu=False)  # (Ho*Wo, 128)
        return a2, a5

    xa2, xa5 = stage(x_ref[...])
    ta2, ta5 = stage(t_ref[...])
    xo_ref[...] = xa5.astype(xo_ref.dtype)
    to_ref[...] = ta5.astype(to_ref.dtype)
    d = xa2 - ta2
    l_ref[...] = jnp.zeros_like(l_ref) + jnp.sum(d * d)


# --------------------------------------------------------------------------
# Wrappers
# --------------------------------------------------------------------------
def _im2col3x3(v):
    # (N, H, W, C) -> (N, H*W, 9*C), taps ordered (dy, dx, c) to match
    # w.reshape(9*C, Cout).  Only used for the tiny-Cin first conv (C=3).
    N, H, W, C = v.shape
    vp = jnp.pad(v, ((0, 0), (1, 1), (1, 1), (0, 0)))
    cols = [vp[:, dy:dy + H, dx:dx + W, :]
            for dy in range(3) for dx in range(3)]
    return jnp.concatenate(cols, axis=-1).reshape(N, H * W, 9 * C)


def vgg16_mloss_forward(x_nchw, target_nchw, params):
    w1, b1, w2, b2, w3, b3 = params
    x = jnp.transpose(x_nchw, (0, 2, 3, 1))             # NCHW -> NHWC
    t = jnp.transpose(target_nchw, (0, 2, 3, 1))
    N, H, W, Cin = x.shape
    C1 = w1.shape[-1]                                   # 64
    C2 = w2.shape[-1]                                   # 64
    C3 = w3.shape[-1]                                   # 128
    Ho, Wo = H // 2, W // 2

    # ---- Kernel A: layers 0+1 and loss point i == 1 -----------------------
    xp = _im2col3x3(x)                                  # (N, H*W, 27)
    tp = _im2col3x3(t)
    x1, t1, l1p = pl.pallas_call(
        _conv1_relu_mse_kernel,
        out_shape=(jax.ShapeDtypeStruct((N, H * W, C1), jnp.float32),
                   jax.ShapeDtypeStruct((N, H * W, C1), jnp.float32),
                   jax.ShapeDtypeStruct((N, 1, 1), jnp.float32)),
        grid=(N,),
        in_specs=[
            pl.BlockSpec((None, H * W, 9 * Cin), lambda n: (n, 0, 0)),
            pl.BlockSpec((None, H * W, 9 * Cin), lambda n: (n, 0, 0)),
            pl.BlockSpec((9 * Cin, C1), lambda n: (0, 0)),
            pl.BlockSpec((1, C1), lambda n: (0, 0)),
        ],
        out_specs=(
            pl.BlockSpec((None, H * W, C1), lambda n: (n, 0, 0)),
            pl.BlockSpec((None, H * W, C1), lambda n: (n, 0, 0)),
            pl.BlockSpec((None, 1, 1), lambda n: (n, 0, 0)),
        ),
        compiler_params=pltpu.CompilerParams(
            dimension_semantics=("parallel",)),
    )(xp, tp, w1.reshape(9 * Cin, C1), b1.reshape(1, C1))

    # ---- Kernel B: layers 2..5 and loss point i == 3 -----------------------
    x1 = x1.reshape(N, H, W, C1)                        # free reshapes
    t1 = t1.reshape(N, H, W, C1)
    x5, t5, l2p = pl.pallas_call(
        _conv2_pool_conv3_kernel,
        out_shape=(jax.ShapeDtypeStruct((N, Ho * Wo, C3), jnp.float32),
                   jax.ShapeDtypeStruct((N, Ho * Wo, C3), jnp.float32),
                   jax.ShapeDtypeStruct((N, 1, 1), jnp.float32)),
        grid=(N,),
        in_specs=[
            pl.BlockSpec((None, H, W, C1), lambda n: (n, 0, 0, 0)),
            pl.BlockSpec((None, H, W, C1), lambda n: (n, 0, 0, 0)),
            pl.BlockSpec((3, 3 * C1, C2), lambda n: (0, 0, 0)),
            pl.BlockSpec((1, C2), lambda n: (0, 0)),
            pl.BlockSpec((3, 3 * C2, C3), lambda n: (0, 0, 0)),
            pl.BlockSpec((1, C3), lambda n: (0, 0)),
        ],
        out_specs=(
            pl.BlockSpec((None, Ho * Wo, C3), lambda n: (n, 0, 0)),
            pl.BlockSpec((None, Ho * Wo, C3), lambda n: (n, 0, 0)),
            pl.BlockSpec((None, 1, 1), lambda n: (n, 0, 0)),
        ),
        scratch_shapes=[
            pltpu.VMEM((H + 2, W + 2, C1), jnp.float32),    # conv2 pad buffer
            pltpu.VMEM((Ho + 2, Wo + 2, C2), jnp.float32),  # conv3 pad buffer
            pltpu.VMEM((Ho, W, C2), jnp.float32),           # maxpool row-max
        ],
        compiler_params=pltpu.CompilerParams(
            dimension_semantics=("parallel",)),
    )(x1, t1,
      w2.reshape(3, 3 * C1, C2), b2.reshape(1, C2),
      w3.reshape(3, 3 * C2, C3), b3.reshape(1, C3))

    n_pix = float(N * H * W)
    loss = jnp.sum(l1p) / (n_pix * C1) + jnp.sum(l2p) / (n_pix * C2)
    return loss, (x5.reshape(N, Ho, Wo, C3), t5.reshape(N, Ho, Wo, C3))


# --------------------------------------------------------------------------
# Pure-JAX reference (for correctness check)
# --------------------------------------------------------------------------
def ref_forward(x_nchw, target_nchw, params):
    x = jnp.transpose(x_nchw, (0, 2, 3, 1))
    t = jnp.transpose(target_nchw, (0, 2, 3, 1))
    w1, b1, w2, b2, w3, b3 = params

    def conv(v, w, b):
        return jax.lax.conv_general_dilated(
            v, w, window_strides=(1, 1), padding="SAME",
            dimension_numbers=("NHWC", "HWIO", "NHWC"),
            precision=jax.lax.Precision.HIGHEST) + b

    def pool(v):
        N, H, W, C = v.shape
        return v.reshape(N, H // 2, 2, W // 2, 2, C).max(axis=(2, 4))

    x = jax.nn.relu(conv(x, w1, b1))
    t = jax.nn.relu(conv(t, w1, b1))
    loss = jnp.mean((x - t) ** 2)
    x = jax.nn.relu(conv(x, w2, b2))
    t = jax.nn.relu(conv(t, w2, b2))
    loss = loss + jnp.mean((x - t) ** 2)
    x = pool(x)
    t = pool(t)
    x = conv(x, w3, b3)
    t = conv(t, w3, b3)
    return loss, (x, t)


if __name__ == "__main__":
    key = jax.random.PRNGKey(0)
    ks = jax.random.split(key, 8)

    # Small shapes consistent with the module: batch=2, VGG needs 3 input
    # channels, spatial 16x16.  Conv channel counts follow VGG16 (64, 64, 128).
    N, Cin, H, W = 2, 3, 16, 16
    x = jax.random.normal(ks[0], (N, Cin, H, W), jnp.float32)
    target = jax.random.normal(ks[1], (N, Cin, H, W), jnp.float32)

    # Deterministic synthetic "VGG" weights, HWIO layout.
    w1 = jax.random.normal(ks[2], (3, 3, 3, 64), jnp.float32) * 0.2
    b1 = jax.random.normal(ks[3], (64,), jnp.float32) * 0.1
    w2 = jax.random.normal(ks[4], (3, 3, 64, 64), jnp.float32) * 0.05
    b2 = jax.random.normal(ks[5], (64,), jnp.float32) * 0.1
    w3 = jax.random.normal(ks[6], (3, 3, 64, 128), jnp.float32) * 0.05
    b3 = jax.random.normal(ks[7], (128,), jnp.float32) * 0.1
    params = (w1, b1, w2, b2, w3, b3)

    loss, (xf, tf) = vgg16_mloss_forward(x, target, params)
    loss = jax.block_until_ready(loss)

    ref_loss, (rxf, rtf) = ref_forward(x, target, params)
    # Kernel matmuls use default MXU precision (bf16 passes); reference uses
    # Precision.HIGHEST -> compare at a slightly relaxed tolerance.
    assert jnp.allclose(loss, ref_loss, rtol=5e-3, atol=1e-4), (loss, ref_loss)
    assert jnp.allclose(xf, rxf, rtol=5e-3, atol=5e-3)
    assert jnp.allclose(tf, rtf, rtol=5e-3, atol=5e-3)

    print("KERNEL_OK")
</pallas_src>

<mosaic_0001>
module attributes {stable_mosaic.version = 11 : i64} {
  func.func @_conv1_relu_mse_kernel(%arg0: i32, %arg1: memref<1x256x27xf32, #tpu.memory_space<vmem>>, %arg2: memref<1x256x27xf32, #tpu.memory_space<vmem>>, %arg3: memref<27x64xf32, #tpu.memory_space<vmem>>, %arg4: memref<1x64xf32, #tpu.memory_space<vmem>>, %arg5: memref<1x256x64xf32, #tpu.memory_space<vmem>>, %arg6: memref<1x256x64xf32, #tpu.memory_space<vmem>>, %arg7: memref<1x1x1xf32, #tpu.memory_space<vmem>>) attributes {dimension_semantics = [#tpu.dimension_semantics<parallel>], iteration_bounds = array<i64: 2>, scalar_prefetch = 0 : i64, scratch_operands = 0 : i64, tpu.core_type = #tpu.core_type<tc>, window_params = [{transform_indices = @transform_0, window_bounds = array<i64: 1, 256, 27>}, {transform_indices = @transform_1, window_bounds = array<i64: 1, 256, 27>}, {pipeline_mode = #tpu.pipeline_mode<synchronous>, transform_indices = @transform_2, window_bounds = array<i64: 27, 64>}, {pipeline_mode = #tpu.pipeline_mode<synchronous>, transform_indices = @transform_3, window_bounds = array<i64: 1, 64>}, {transform_indices = @transform_4, window_bounds = array<i64: 1, 256, 64>}, {transform_indices = @transform_5, window_bounds = array<i64: 1, 256, 64>}, {transform_indices = @transform_6, window_bounds = array<i64: 1, 1, 1>}]} {
    %c0 = arith.constant 0 : index
    %c0_0 = arith.constant 0 : index
    %0 = vector.load %arg3[%c0, %c0_0] : memref<27x64xf32, #tpu.memory_space<vmem>>, vector<27x64xf32>
    %c0_1 = arith.constant 0 : index
    %c0_2 = arith.constant 0 : index
    %1 = vector.load %arg4[%c0_1, %c0_2] : memref<1x64xf32, #tpu.memory_space<vmem>>, vector<1x64xf32>
    %c0_3 = arith.constant 0 : index
    %c0_4 = arith.constant 0 : index
    %c0_5 = arith.constant 0 : index
    %2 = vector.load %arg1[%c0_3, %c0_4, %c0_5] : memref<1x256x27xf32, #tpu.memory_space<vmem>>, vector<1x256x27xf32>
    %3 = vector.shape_cast %2 : vector<1x256x27xf32> to vector<256x27xf32>
    %cst = arith.constant dense<0.000000e+00> : vector<256x64xf32>
    %4 = tpu.matmul %3, %0, %cst {dimension_numbers = #tpu.dot_dimension_numbers<[1], [0], [0], [1], [0, 0, 1, 1], [], []>} : vector<256x27xf32>, vector<27x64xf32>, vector<256x64xf32> -> vector<256x64xf32>
    %5 = vector.broadcast %1 : vector<1x64xf32> to vector<256x64xf32>
    %6 = arith.addf %4, %5 : vector<256x64xf32>
    %cst_6 = arith.constant 0.000000e+00 : f32
    %7 = vector.broadcast %cst_6 : f32 to vector<256x64xf32>
    %8 = arith.maximumf %6, %7 : vector<256x64xf32>
    %c0_7 = arith.constant 0 : index
    %c0_8 = arith.constant 0 : index
    %c0_9 = arith.constant 0 : index
    %9 = vector.load %arg2[%c0_7, %c0_8, %c0_9] : memref<1x256x27xf32, #tpu.memory_space<vmem>>, vector<1x256x27xf32>
    %10 = vector.shape_cast %9 : vector<1x256x27xf32> to vector<256x27xf32>
    %cst_10 = arith.constant dense<0.000000e+00> : vector<256x64xf32>
    %11 = tpu.matmul %10, %0, %cst_10 {dimension_numbers = #tpu.dot_dimension_numbers<[1], [0], [0], [1], [0, 0, 1, 1], [], []>} : vector<256x27xf32>, vector<27x64xf32>, vector<256x64xf32> -> vector<256x64xf32>
    %12 = vector.broadcast %1 : vector<1x64xf32> to vector<256x64xf32>
    %13 = arith.addf %11, %12 : vector<256x64xf32>
    %cst_11 = arith.constant 0.000000e+00 : f32
    %14 = vector.broadcast %cst_11 : f32 to vector<256x64xf32>
    %15 = arith.maximumf %13, %14 : vector<256x64xf32>
    %c0_12 = arith.constant 0 : index
    %c0_13 = arith.constant 0 : index
    %c0_14 = arith.constant 0 : index
    %16 = vector.load %arg5[%c0_12, %c0_13, %c0_14] : memref<1x256x64xf32, #tpu.memory_space<vmem>>, vector<1x256x64xf32>
    %17 = vector.shape_cast %16 : vector<1x256x64xf32> to vector<256x64xf32>
    %18 = vector.shape_cast %8 : vector<256x64xf32> to vector<1x256x64xf32>
    tpu.vector_store %arg5[%c0_12, %c0_13, %c0_14], %18 {strides = array<i32>} : memref<1x256x64xf32, #tpu.memory_space<vmem>>, vector<1x256x64xf32>,
    %c0_15 = arith.constant 0 : index
    %c0_16 = arith.constant 0 : index
    %c0_17 = arith.constant 0 : index
    %19 = vector.load %arg6[%c0_15, %c0_16, %c0_17] : memref<1x256x64xf32, #tpu.memory_space<vmem>>, vector<1x256x64xf32>
    %20 = vector.shape_cast %19 : vector<1x256x64xf32> to vector<256x64xf32>
    %21 = vector.shape_cast %15 : vector<256x64xf32> to vector<1x256x64xf32>
    tpu.vector_store %arg6[%c0_15, %c0_16, %c0_17], %21 {strides = array<i32>} : memref<1x256x64xf32, #tpu.memory_space<vmem>>, vector<1x256x64xf32>,
    %22 = arith.subf %8, %15 : vector<256x64xf32>
    %cst_18 = arith.constant 0.000000e+00 : f32
    %23 = vector.broadcast %cst_18 : f32 to vector<1x1xf32>
    %24 = arith.mulf %22, %22 : vector<256x64xf32>
    %25 = vector.shape_cast %24 : vector<256x64xf32> to vector<1x256x64xf32>
    %cst_19 = arith.constant dense<0.000000e+00> : vector<1xf32>
    %26 = vector.multi_reduction <add>, %25, %cst_19 [1, 2] : vector<1x256x64xf32> to vector<1xf32>
    %27 = vector.shape_cast %26 : vector<1xf32> to vector<1x1x1xf32>
    %28 = vector.extract %27[0, 0, 0] : f32 from vector<1x1x1xf32>
    %29 = vector.broadcast %28 : f32 to vector<1x1xf32>
    %30 = arith.addf %23, %29 : vector<1x1xf32>
    %c0_20 = arith.constant 0 : index
    %c0_21 = arith.constant 0 : index
    %c0_22 = arith.constant 0 : index
    %31 = vector.load %arg7[%c0_20, %c0_21, %c0_22] : memref<1x1x1xf32, #tpu.memory_space<vmem>>, vector<1x1x1xf32>
    %32 = vector.shape_cast %31 : vector<1x1x1xf32> to vector<1x1xf32>
    %33 = vector.shape_cast %30 : vector<1x1xf32> to vector<1x1x1xf32>
    tpu.vector_store %arg7[%c0_20, %c0_21, %c0_22], %33 {strides = array<i32>} : memref<1x1x1xf32, #tpu.memory_space<vmem>>, vector<1x1x1xf32>,
    return
  }
  func.func @transform_0(%arg0: i32) -> (i32, i32, i32) {
    %c0_i32 = arith.constant 0 : i32
    %c0_i32_0 = arith.constant 0 : i32
    %c0_i32_1 = arith.constant 0 : i32
    return %arg0, %c0_i32, %c0_i32_0 : i32, i32, i32
  }
  func.func @transform_1(%arg0: i32) -> (i32, i32, i32) {
    %c0_i32 = arith.constant 0 : i32
    %c0_i32_0 = arith.constant 0 : i32
    %c0_i32_1 = arith.constant 0 : i32
    return %arg0, %c0_i32, %c0_i32_0 : i32, i32, i32
  }
  func.func @transform_2(%arg0: i32) -> (i32, i32) {
    %c0_i32 = arith.constant 0 : i32
    %c0_i32_0 = arith.constant 0 : i32
    %c0_i32_1 = arith.constant 0 : i32
    return %c0_i32, %c0_i32_0 : i32, i32
  }
  func.func @transform_3(%arg0: i32) -> (i32, i32) {
    %c0_i32 = arith.constant 0 : i32
    %c0_i32_0 = arith.constant 0 : i32
    %c0_i32_1 = arith.constant 0 : i32
    return %c0_i32, %c0_i32_0 : i32, i32
  }
  func.func @transform_4(%arg0: i32) -> (i32, i32, i32) {
    %c0_i32 = arith.constant 0 : i32
    %c0_i32_0 = arith.constant 0 : i32
    %c0_i32_1 = arith.constant 0 : i32
    return %arg0, %c0_i32, %c0_i32_0 : i32, i32, i32
  }
  func.func @transform_5(%arg0: i32) -> (i32, i32, i32) {
    %c0_i32 = arith.constant 0 : i32
    %c0_i32_0 = arith.constant 0 : i32
    %c0_i32_1 = arith.constant 0 : i32
    return %arg0, %c0_i32, %c0_i32_0 : i32, i32, i32
  }
  func.func @transform_6(%arg0: i32) -> (i32, i32, i32) {
    %c0_i32 = arith.constant 0 : i32
    %c0_i32_0 = arith.constant 0 : i32
    %c0_i32_1 = arith.constant 0 : i32
    return %arg0, %c0_i32, %c0_i32_0 : i32, i32, i32
  }
}

</mosaic_0001>

<llo_original>
// kernel: tpu_custom_call.1
$region0: #{tpu_custom_call.1}
  #allocation0 [shape = 'u32[]', space=smem, size = 0x4, offset = 0x4, fixed_abs, tag = 'smem constant byte address 0x4 - core index']
  #allocation1 [shape = 'u32[144,128]{1,0:T(1,128)}', space=vmem, size = 0x12000, scoped, tag = 'internal scratch']
  %s0 = inlined_call_operand.vmem [shape: f32[2,256,27], index: 0, kind: input, shape index: {}]
  %s1 = inlined_call_operand.vmem [shape: f32[2,256,27], index: 1, kind: input, shape index: {}]
  %s2 = inlined_call_operand.vmem [shape: f32[27,64], index: 2, kind: input, shape index: {}]
  %s3 = inlined_call_operand.vmem [shape: f32[1,64], index: 3, kind: input, shape index: {}]
  %s4 = inlined_call_operand.vmem [shape: f32[2,256,64], index: 4, kind: output, shape index: {0}]
  %s5 = inlined_call_operand.vmem [shape: f32[2,256,64], index: 5, kind: output, shape index: {1}]
  %s6 = inlined_call_operand.vmem [shape: f32[2,1,1], index: 6, kind: output, shape index: {2}]
  %7 = xla_tuple %s4, %s5, %s6
  %s8 = sld [smem:[#allocation0]]
  $region65: #{tpu_custom_call.1} parent=0
    _
  %s10 = ssub.s32 1, %s8
  %s11 = scalar_select 0, %s10, %s8
  loop: start=0, step=1, limit=4
  $region2: #{tpu_custom_call.1} parent=0 // loop_pre_header
    _
  $region3: #{tpu_custom_call.1} parent=0 // loop_header
    %s13 = sphi 0, %s17
    %p14 = scmp.ge.s32.totalorder %s13, 4
    %s23 = sphi 0, %s25
    %s26 = sphi 0, %s23
    %s27 = sphi 0, %s26
    %s43 = sphi 0, %s27
    %s49 = sphi 0, %s51
    %s52 = sphi 0, %s49
    %s53 = sphi 0, %s52
    %s69 = sphi 0, %s53
    %s73 = sphi 0, %s73
    %s75 = sphi 0, %s73
    %s76 = sphi 0, %s75
    %s90 = sphi 0, %s76
    %s94 = sphi 0, %s94
    %s96 = sphi 0, %s94
    %s97 = sphi 0, %s96
    %s111 = sphi 0, %s97
    %s117 = sphi 0, %s119
    %s120 = sphi 0, %s117
    %s121 = sphi 0, %s120
    %s137 = sphi 0, %s121
    %s143 = sphi 0, %s145
    %s146 = sphi 0, %s143
    %s147 = sphi 0, %s146
    %s163 = sphi 0, %s147
    %s169 = sphi 0, %s171
    %s172 = sphi 0, %s169
    %s173 = sphi 0, %s172
    %s189 = sphi 0, %s173
  $region4: #{tpu_custom_call.1} parent=0 // loop_header_branch
    %16 = sbr.rel (%p14) target = $region8
  $region5: #{tpu_custom_call.1} parent=0 // loop_body
    %s18 = ssub.s32 %s13, 1
    %s19 = ssub.s32 %s13, 2
    %s20 = sadd.s32 %s13, 1
    %s21 = ssub.s32 %s13, %s20
    %p22 = scmp.eq.s32.totalorder %s21, 0
    %s24 = sadd.s32 %s23, 1
    %s25 = scalar_select %p22, %s23, %s24
    %p28 = pneg %p22
    %p29 = scmp.eq.s32.totalorder %s13, 1
    %p30 = por %p28, %p29
    %p31 = scmp.ne.s32.totalorder %s23, %s26
    %p32 = scmp.eq.s32.totalorder %s13, 0
    %p33 = por %p31, %p32
    %p34 = scmp.ne.s32.totalorder %s23, %s26
    %p35 = scmp.eq.s32.totalorder %s18, 1
    %p36 = por %p34, %p35
    %p37 = scmp.ne.s32.totalorder %s26, %s27
    %p38 = scmp.eq.s32.totalorder %s18, 0
    %p39 = por %p37, %p38
    %p40 = scmp.ne.s32.totalorder %s26, %s27
    %p41 = scmp.eq.s32.totalorder %s19, 1
    %p42 = por %p40, %p41
    %p44 = scmp.ne.s32.totalorder %s27, %s43
    %p45 = scmp.eq.s32.totalorder %s19, 0
    %p46 = por %p44, %p45
    %s47 = ssub.s32 %s13, %s20
    %p48 = scmp.eq.s32.totalorder %s47, 0
    %s50 = sadd.s32 %s49, 1
    %s51 = scalar_select %p48, %s49, %s50
    %p54 = pneg %p48
    %p55 = scmp.eq.s32.totalorder %s13, 1
    %p56 = por %p54, %p55
    %p57 = scmp.ne.s32.totalorder %s49, %s52
    %p58 = scmp.eq.s32.totalorder %s13, 0
    %p59 = por %p57, %p58
    %p60 = scmp.ne.s32.totalorder %s49, %s52
    %p61 = scmp.eq.s32.totalorder %s18, 1
    %p62 = por %p60, %p61
    %p63 = scmp.ne.s32.totalorder %s52, %s53
    %p64 = scmp.eq.s32.totalorder %s18, 0
    %p65 = por %p63, %p64
    %p66 = scmp.ne.s32.totalorder %s52, %s53
    %p67 = scmp.eq.s32.totalorder %s19, 1
    %p68 = por %p66, %p67
    %p70 = scmp.ne.s32.totalorder %s53, %s69
    %p71 = scmp.eq.s32.totalorder %s19, 0
    %p72 = por %p70, %p71
    %s74 = sadd.s32 %s73, 1
    %p77 = scmp.eq.s32.totalorder %s13, 1
    %p78 = scmp.ne.s32.totalorder %s73, %s75
    %p79 = scmp.eq.s32.totalorder %s13, 0
    %p80 = por %p78, %p79
    %p81 = scmp.ne.s32.totalorder %s73, %s75
    %p82 = scmp.eq.s32.totalorder %s18, 1
    %p83 = por %p81, %p82
    %p84 = scmp.ne.s32.totalorder %s75, %s76
    %p85 = scmp.eq.s32.totalorder %s18, 0
    %p86 = por %p84, %p85
    %p87 = scmp.ne.s32.totalorder %s75, %s76
    %p88 = scmp.eq.s32.totalorder %s19, 1
    %p89 = por %p87, %p88
    %p91 = scmp.ne.s32.totalorder %s76, %s90
    %p92 = scmp.eq.s32.totalorder %s19, 0
    %p93 = por %p91, %p92
    %s95 = sadd.s32 %s94, 1
    %p98 = scmp.eq.s32.totalorder %s13, 1
    %p99 = scmp.ne.s32.totalorder %s94, %s96
    %p100 = scmp.eq.s32.totalorder %s13, 0
    %p101 = por %p99, %p100
    %p102 = scmp.ne.s32.totalorder %s94, %s96
    %p103 = scmp.eq.s32.totalorder %s18, 1
    %p104 = por %p102, %p103
    %p105 = scmp.ne.s32.totalorder %s96, %s97
    %p106 = scmp.eq.s32.totalorder %s18, 0
    %p107 = por %p105, %p106
    %p108 = scmp.ne.s32.totalorder %s96, %s97
    %p109 = scmp.eq.s32.totalorder %s19, 1
    %p110 = por %p108, %p109
    %p112 = scmp.ne.s32.totalorder %s97, %s111
    %p113 = scmp.eq.s32.totalorder %s19, 0
    %p114 = por %p112, %p113
    %s115 = ssub.s32 %s13, %s20
    %p116 = scmp.eq.s32.totalorder %s115, 0
    %s118 = sadd.s32 %s117, 1
    %s119 = scalar_select %p116, %s117, %s118
    %p122 = pneg %p116
    %p123 = scmp.eq.s32.totalorder %s13, 1
    %p124 = por %p122, %p123
    %p125 = scmp.ne.s32.totalorder %s117, %s120
    %p126 = scmp.eq.s32.totalorder %s13, 0
    %p127 = por %p125, %p126
    %p128 = scmp.ne.s32.totalorder %s117, %s120
    %p129 = scmp.eq.s32.totalorder %s18, 1
    %p130 = por %p128, %p129
    %p131 = scmp.ne.s32.totalorder %s120, %s121
    %p132 = scmp.eq.s32.totalorder %s18, 0
    %p133 = por %p131, %p132
    %p134 = scmp.ne.s32.totalorder %s120, %s121
    %p135 = scmp.eq.s32.totalorder %s19, 1
    %p136 = por %p134, %p135
    %p138 = scmp.ne.s32.totalorder %s121, %s137
    %p139 = scmp.eq.s32.totalorder %s19, 0
    %p140 = por %p138, %p139
    %s141 = ssub.s32 %s13, %s20
    %p142 = scmp.eq.s32.totalorder %s141, 0
    %s144 = sadd.s32 %s143, 1
    %s145 = scalar_select %p142, %s143, %s144
    %p148 = pneg %p142
    %p149 = scmp.eq.s32.totalorder %s13, 1
    %p150 = por %p148, %p149
    %p151 = scmp.ne.s32.totalorder %s143, %s146
    %p152 = scmp.eq.s32.totalorder %s13, 0
    %p153 = por %p151, %p152
    %p154 = scmp.ne.s32.totalorder %s143, %s146
    %p155 = scmp.eq.s32.totalorder %s18, 1
    %p156 = por %p154, %p155
    %p157 = scmp.ne.s32.totalorder %s146, %s147
    %p158 = scmp.eq.s32.totalorder %s18, 0
    %p159 = por %p157, %p158
    %p160 = scmp.ne.s32.totalorder %s146, %s147
    %p161 = scmp.eq.s32.totalorder %s19, 1
    %p162 = por %p160, %p161
    %p164 = scmp.ne.s32.totalorder %s147, %s163
    %p165 = scmp.eq.s32.totalorder %s19, 0
    %p166 = por %p164, %p165
    %s167 = ssub.s32 %s13, %s20
    %p168 = scmp.eq.s32.totalorder %s167, 0
    %s170 = sadd.s32 %s169, 1
    %s171 = scalar_select %p168, %s169, %s170
    %p174 = pneg %p168
    %p175 = scmp.eq.s32.totalorder %s13, 1
    %p176 = por %p174, %p175
    %p177 = scmp.ne.s32.totalorder %s169, %s172
    %p178 = scmp.eq.s32.totalorder %s13, 0
    %p179 = por %p177, %p178
    %p180 = scmp.ne.s32.totalorder %s169, %s172
    %p181 = scmp.eq.s32.totalorder %s18, 1
    %p182 = por %p180, %p181
    %p183 = scmp.ne.s32.totalorder %s172, %s173
    %p184 = scmp.eq.s32.totalorder %s18, 0
    %p185 = por %p183, %p184
    %p186 = scmp.ne.s32.totalorder %s172, %s173
    %p187 = scmp.eq.s32.totalorder %s19, 1
    %p188 = por %p186, %p187
    %p190 = scmp.ne.s32.totalorder %s173, %s189
    %p191 = scmp.eq.s32.totalorder %s19, 0
    %p192 = por %p190, %p191
    %p193 = scmp.le.s32.totalorder 1, %s13
    %p194 = scmp.lt.s32.totalorder %s13, 3
    %p195 = pnand %p193, %p194
    %p196 = pneg %p195
    // Predicated region
    $region9: #{tpu_custom_call.1} parent=5 // pred_check
      _
    $region10: #{tpu_custom_call.1} parent=5 // pred_check_branch
      %198 = sbr.rel (%p195) target = $region12
    $region11: #{tpu_custom_call.1} parent=5 // pred_region
      %s199 = ssub.s32 %s13, 1
      // Predicated region
      $region13: #{tpu_custom_call.1} parent=11 // pred_check
        %p200 = pneg %p86
      $region14: #{tpu_custom_call.1} parent=11 // pred_check_branch
        %202 = sbr.rel (%p200) target = $region16
      $region15: #{tpu_custom_call.1} parent=11 // pred_region
        _
      $region16: #{tpu_custom_call.1} parent=11 // pred_fallthru
        _
      // Predicated region
      $region17: #{tpu_custom_call.1} parent=11 // pred_check
        %p203 = pneg %p107
      $region18: #{tpu_custom_call.1} parent=11 // pred_check_branch
        %205 = sbr.rel (%p203) target = $region20
      $region19: #{tpu_custom_call.1} parent=11 // pred_region
        _
      $region20: #{tpu_custom_call.1} parent=11 // pred_fallthru
        _
    $region12: #{tpu_custom_call.1} parent=5 // pred_fallthru
      _
    %p206 = scmp.lt.s32.totalorder %s13, 2
    // Predicated region
    $region21: #{tpu_custom_call.1} parent=5 // pred_check
      %p207 = pneg %p206
    $region22: #{tpu_custom_call.1} parent=5 // pred_check_branch
      %209 = sbr.rel (%p207) target = $region24
    $region23: #{tpu_custom_call.1} parent=5 // pred_region
      // Predicated region
      $region25: #{tpu_custom_call.1} parent=23 // pred_check
        %p210 = pneg %p33
      $region26: #{tpu_custom_call.1} parent=23 // pred_check_branch
        %212 = sbr.rel (%p210) target = $region28
      $region27: #{tpu_custom_call.1} parent=23 // pred_region
        %p213 = scmp.lt.s32.totalorder %s13, 1
        %s214 = scalar_select %p213, %s13, 1
        %s215 = smul.addr %s214, 32
        %s216 = smul.addr %s215, 8
        %s217 = scalar_lea.vmem %s0, %s216
      $region28: #{tpu_custom_call.1} parent=23 // pred_fallthru
        _
      // Predicated region
      $region29: #{tpu_custom_call.1} parent=23 // pred_check
        %p218 = pneg %p59
      $region30: #{tpu_custom_call.1} parent=23 // pred_check_branch
        %220 = sbr.rel (%p218) target = $region32
      $region31: #{tpu_custom_call.1} parent=23 // pred_region
        %p221 = scmp.lt.s32.totalorder %s13, 1
        %s222 = scalar_select %p221, %s13, 1
        %s223 = smul.addr %s222, 32
        %s224 = smul.addr %s223, 8
        %s225 = scalar_lea.vmem %s1, %s224
      $region32: #{tpu_custom_call.1} parent=23 // pred_fallthru
        _
    $region24: #{tpu_custom_call.1} parent=5 // pred_fallthru
      _
    %p226 = scmp.le.s32.totalorder 1, %s13
    %p227 = scmp.lt.s32.totalorder %s13, 3
    %p228 = pnand %p226, %p227
    %p229 = pneg %p228
    // Predicated region
    $region33: #{tpu_custom_call.1} parent=5 // pred_check
      _
    $region34: #{tpu_custom_call.1} parent=5 // pred_check_branch
      %231 = sbr.rel (%p228) target = $region36
    $region35: #{tpu_custom_call.1} parent=5 // pred_region
      %s232 = ssub.s32 %s13, 1
      %p233 = scmp.lt.s32.totalorder %s18, 1
      %s234 = scalar_select %p233, %s18, 1
      %s235 = smul.addr %s234, 32
      %s236 = smul.addr %s235, 8
      %s237 = scalar_lea.vmem %s0, %s236
      %p238 = pneg %p39
      %p239 = pneg %p36
      %p240 = scmp.lt.s32.totalorder %s18, 1
      %s241 = scalar_select %p240, %s18, 1
      %s242 = smul.addr %s241, 32
      %s243 = smul.addr %s242, 8
      %s244 = scalar_lea.vmem %s1, %s243
      %p245 = pneg %p65
      %p246 = pneg %p62
      %p247 = pneg %p86
      %p248 = pneg %p83
      %p249 = pneg %p107
      %p250 = pneg %p104
      %p251 = pneg %p133
      %p252 = pneg %p130
      %p253 = scmp.lt.s32.totalorder %s18, 1
      %s254 = scalar_select %p253, %s18, 1
      %s255 = smul.addr %s254, 32
      %s256 = smul.addr %s255, 8
      %s257 = scalar_lea.vmem %s4, %s256
      %p258 = pneg %p159
      %p259 = pneg %p156
      %p260 = scmp.lt.s32.totalorder %s18, 1
      %s261 = scalar_select %p260, %s18, 1
      %s262 = smul.addr %s261, 32
      %s263 = smul.addr %s262, 8
      %s264 = scalar_lea.vmem %s5, %s263
      %p265 = pneg %p185
      %p266 = pneg %p182
      %p267 = scmp.lt.s32.totalorder %s18, 1
      %s268 = scalar_select %p267, %s18, 1
      %s269 = scalar_lea.vmem %s6, %s268
      %p270 = scmp.lt.s32.totalorder %s18, 1
      %s271 = scalar_select %p270, %s18, 1
      %s272 = smul.addr %s271, 32
      %s273 = smul.addr %s272, 8
      %s274 = scalar_lea.vmem %s0, %s273
      %p275 = scmp.lt.s32.totalorder %s18, 1
      %s276 = scalar_select %p275, %s18, 1
      %s277 = smul.addr %s276, 32
      %s278 = smul.addr %s277, 8
      %s279 = scalar_lea.vmem %s1, %s278
      %p280 = scmp.lt.s32.totalorder %s18, 1
      %s281 = scalar_select %p280, %s18, 1
      %s282 = smul.addr %s281, 32
      %s283 = smul.addr %s282, 8
      %s284 = scalar_lea.vmem %s4, %s283
      %p285 = scmp.lt.s32.totalorder %s18, 1
      %s286 = scalar_select %p285, %s18, 1
      %s287 = smul.addr %s286, 32
      %s288 = smul.addr %s287, 8
      %s289 = scalar_lea.vmem %s5, %s288
      %p290 = scmp.lt.s32.totalorder %s18, 1
      %s291 = scalar_select %p290, %s18, 1
      %s292 = scalar_lea.vmem %s6, %s291
      %v293 = vld [vmem:[%s2] sm:$0xff]
      %v294 = vld [vmem:[%s2 + $0x8] sm:$0xff]
      %v295 = vld [vmem:[%s2 + $0x10] sm:$0xff]
      %v296 = vld [vmem:[%s2 + $0x18] sm:$0x7]
      %v297 = vld [vmem:[%s3] sm:$0x1]
      %v298 = vld [vmem:[%s274] sm:$0xff]
      %v299 = vld [vmem:[%s274 + $0x8] sm:$0xff]
      %v300 = vld [vmem:[%s274 + $0x10] sm:$0xff]
      %v301 = vld [vmem:[%s274 + $0x18] sm:$0xff]
      %v302 = vld [vmem:[%s274 + $0x20] sm:$0xff]
      %v303 = vld [vmem:[%s274 + $0x28] sm:$0xff]
      %v304 = vld [vmem:[%s274 + $0x30] sm:$0xff]
      %v305 = vld [vmem:[%s274 + $0x38] sm:$0xff]
      %v306 = vld [vmem:[%s274 + $0x40] sm:$0xff]
      %v307 = vld [vmem:[%s274 + $0x48] sm:$0xff]
      %v308 = vld [vmem:[%s274 + $0x50] sm:$0xff]
      %v309 = vld [vmem:[%s274 + $0x58] sm:$0xff]
      %v310 = vld [vmem:[%s274 + $0x60] sm:$0xff]
      %v311 = vld [vmem:[%s274 + $0x68] sm:$0xff]
      %v312 = vld [vmem:[%s274 + $0x70] sm:$0xff]
      %v313 = vld [vmem:[%s274 + $0x78] sm:$0xff]
      %v314 = vld [vmem:[%s274 + $0x80] sm:$0xff]
      %v315 = vld [vmem:[%s274 + $0x88] sm:$0xff]
      %v316 = vld [vmem:[%s274 + $0x90] sm:$0xff]
      %v317 = vld [vmem:[%s274 + $0x98] sm:$0xff]
      %v318 = vld [vmem:[%s274 + $0xa0] sm:$0xff]
      %v319 = vld [vmem:[%s274 + $0xa8] sm:$0xff]
      %v320 = vld [vmem:[%s274 + $0xb0] sm:$0xff]
      %v321 = vld [vmem:[%s274 + $0xb8] sm:$0xff]
      %v322 = vld [vmem:[%s274 + $0xc0] sm:$0xff]
      %v323 = vld [vmem:[%s274 + $0xc8] sm:$0xff]
      %v324 = vld [vmem:[%s274 + $0xd0] sm:$0xff]
      %v325 = vld [vmem:[%s274 + $0xd8] sm:$0xff]
      %v326 = vld [vmem:[%s274 + $0xe0] sm:$0xff]
      %v327 = vld [vmem:[%s274 + $0xe8] sm:$0xff]
      %v328 = vld [vmem:[%s274 + $0xf0] sm:$0xff]
      %v329 = vld [vmem:[%s274 + $0xf8] sm:$0xff]
      %v331 = vlaneseq
      %v332 = vshrl.u32 %v331, 7
      %v333 = vsub.s32 0, %v332
      %v334 = vrot.slane %v297, %v333
      %vm336 = vcmask 220160
      %v338 = vsel %vm336, %v298, 0
      %v341 = vsel %vm336, %v299, 0
      %v344 = vsel %vm336, %v300, 0
      %v347 = vsel %vm336, %v301, 0
      %v350 = vsel %vm336, %v302, 0
      %v353 = vsel %vm336, %v303, 0
      %v356 = vsel %vm336, %v304, 0
      %v359 = vsel %vm336, %v305, 0
      %v362 = vsel %vm336, %v306, 0
      %v365 = vsel %vm336, %v307, 0
      %v368 = vsel %vm336, %v308, 0
      %v371 = vsel %vm336, %v309, 0
      %v374 = vsel %vm336, %v310, 0
      %v377 = vsel %vm336, %v311, 0
      %v380 = vsel %vm336, %v312, 0
      %v383 = vsel %vm336, %v313, 0
      %v386 = vsel %vm336, %v314, 0
      %v389 = vsel %vm336, %v315, 0
      %v392 = vsel %vm336, %v316, 0
      %v395 = vsel %vm336, %v317, 0
      %v398 = vsel %vm336, %v318, 0
      %v401 = vsel %vm336, %v319, 0
      %v404 = vsel %vm336, %v320, 0
      %v407 = vsel %vm336, %v321, 0
      %v410 = vsel %vm336, %v322, 0
      %v413 = vsel %vm336, %v323, 0
      %v416 = vsel %vm336, %v324, 0
      %v419 = vsel %vm336, %v325, 0
      %v422 = vsel %vm336, %v326, 0
      %v425 = vsel %vm336, %v327, 0
      %v428 = vsel %vm336, %v328, 0
      %v431 = vsel %vm336, %v329, 0
      %vm433 = vcmask 1042432
      %v435 = vsel %vm433, %v296, 0
      %437 = vmatprep.subr.mxu0 0.0
      %438 = vmatpush1.msra.mxu0 %v293
      %439 = vmatprep.subr.mxu0 0.0
      %440 = vmatpush1.msra.mxu0 %v294
      %441 = vmatprep.subr.mxu0 0.0
      %442 = vmatpush1.msra.mxu0 %v295
      %443 = vmatprep.subr.mxu0 0.0
      %444 = vmatpush1.msra.mxu0 %v435
      %445 = vmatprep.subr.mxu0 0.0
      %446 = vmatpush1.msra.mxu0 0.0
      %447 = vmatprep.subr.mxu0 0.0
      %448 = vmatpush1.msra.mxu0 0.0
      %449 = vmatprep.subr.mxu0 0.0
      %450 = vmatpush1.msra.mxu0 0.0
      %451 = vmatprep.subr.mxu0 0.0
      %452 = vmatpush1.msra.mxu0 0.0
      %453 = vmatprep.subr.mxu0 0.0
      %454 = vmatpush1.msra.mxu0 0.0
      %455 = vmatprep.subr.mxu0 0.0
      %456 = vmatpush1.msra.mxu0 0.0
      %457 = vmatprep.subr.mxu0 0.0
      %458 = vmatpush1.msra.mxu0 0.0
      %459 = vmatprep.subr.mxu0 0.0
      %460 = vmatpush1.msra.mxu0 0.0
      %461 = vmatprep.subr.mxu0 0.0
      %462 = vmatpush1.msra.mxu0 0.0
      %463 = vmatprep.subr.mxu0 0.0
      %464 = vmatpush1.msra.mxu0 0.0
      %465 = vmatprep.subr.mxu0 0.0
      %466 = vmatpush1.msra.mxu0 0.0
      %467 = vmatprep.subr.mxu0 0.0
      %468 = vmatpush1.msra.mxu0 0.0
      %469 = vmatprep.subr.mxu0 0.0
      %470 = vmatpush1.msra.mxu0 0.0
      %471 = vmatprep.subr.mxu0 0.0
      %472 = vmatpush1.msra.mxu0 0.0
      %473 = vmatprep.subr.mxu0 0.0
      %474 = vmatpush1.msra.mxu0 0.0
      %475 = vmatprep.subr.mxu0 0.0
      %476 = vmatpush1.msra.mxu0 0.0
      %477 = vmatprep.subr.mxu0 0.0
      %478 = vmatpush1.msra.mxu0 0.0
      %479 = vmatprep.subr.mxu0 0.0
      %480 = vmatpush1.msra.mxu0 0.0
      %481 = vmatprep.subr.mxu0 0.0
      %482 = vmatpush1.msra.mxu0 0.0
      %483 = vmatprep.subr.mxu0 0.0
      %484 = vmatpush1.msra.mxu0 0.0
      %485 = vmatprep.subr.mxu0 0.0
      %486 = vmatpush1.msra.mxu0 0.0
      %487 = vmatprep.subr.mxu0 0.0
      %488 = vmatpush1.msra.mxu0 0.0
      %489 = vmatprep.subr.mxu0 0.0
      %490 = vmatpush1.msra.mxu0 0.0
      %491 = vmatprep.subr.mxu0 0.0
      %492 = vmatpush1.msra.mxu0 0.0
      %493 = vmatprep.subr.mxu0 0.0
      %494 = vmatpush1.msra.mxu0 0.0
      %495 = vmatprep.subr.mxu0 0.0
      %496 = vmatpush1.msra.mxu0 0.0
      %497 = vmatprep.subr.mxu0 0.0
      %498 = vmatpush1.msra.mxu0 0.0
      %499 = vmatprep.subr.mxu0 0.0
      %500 = vmatpush1.msra.mxu0 0.0
      %501 = vmatprep.mubr.f32.mxu0 0.0
      %502 = vmatmul.mubr.f32.gmra.mrb[0].mxu0 %v338
      %v503 = vpop.f32.mrb[0].mxu0
      %v504 = vadd.f32 %v334, %v503
      %v505 = vpop.f32.mrb[0].mxu0
      %506 = vmatprep.mubr.f32.mxu0 0.0
      %507 = vmatmul.mubr.f32.gmra.mrb[0].mxu0 %v341
      %v508 = vpop.f32.mrb[0].mxu0
      %v509 = vadd.f32 %v334, %v508
      %v510 = vpop.f32.mrb[0].mxu0
      %511 = vmatprep.mubr.f32.mxu0 0.0
      %512 = vmatmul.mubr.f32.gmra.mrb[0].mxu0 %v344
      %v513 = vpop.f32.mrb[0].mxu0
      %v514 = vadd.f32 %v334, %v513
      %v515 = vpop.f32.mrb[0].mxu0
      %516 = vmatprep.mubr.f32.mxu0 0.0
      %517 = vmatmul.mubr.f32.gmra.mrb[0].mxu0 %v347
      %v518 = vpop.f32.mrb[0].mxu0
      %v519 = vadd.f32 %v334, %v518
      %v520 = vpop.f32.mrb[0].mxu0
      %521 = vmatprep.mubr.f32.mxu0 0.0
      %522 = vmatmul.mubr.f32.gmra.mrb[0].mxu0 %v350
      %v523 = vpop.f32.mrb[0].mxu0
      %v524 = vadd.f32 %v334, %v523
      %v525 = vpop.f32.mrb[0].mxu0
      %526 = vmatprep.mubr.f32.mxu0 0.0
      %527 = vmatmul.mubr.f32.gmra.mrb[0].mxu0 %v353
      %v528 = vpop.f32.mrb[0].mxu0
      %v529 = vadd.f32 %v334, %v528
      %v530 = vpop.f32.mrb[0].mxu0
      %531 = vmatprep.mubr.f32.mxu0 0.0
      %532 = vmatmul.mubr.f32.gmra.mrb[0].mxu0 %v356
      %v533 = vpop.f32.mrb[0].mxu0
      %v534 = vadd.f32 %v334, %v533
      %v535 = vpop.f32.mrb[0].mxu0
      %536 = vmatprep.mubr.f32.mxu0 0.0
      %537 = vmatmul.mubr.f32.gmra.mrb[0].mxu0 %v359
      %v538 = vpop.f32.mrb[0].mxu0
      %v539 = vadd.f32 %v334, %v538
      %v540 = vpop.f32.mrb[0].mxu0
      %541 = vmatprep.mubr.f32.mxu0 0.0
      %542 = vmatmul.mubr.f32.gmra.mrb[0].mxu0 %v362
      %v543 = vpop.f32.mrb[0].mxu0
      %v544 = vadd.f32 %v334, %v543
      %v545 = vpop.f32.mrb[0].mxu0
      %546 = vmatprep.mubr.f32.mxu0 0.0
      %547 = vmatmul.mubr.f32.gmra.mrb[0].mxu0 %v365
      %v548 = vpop.f32.mrb[0].mxu0
      %v549 = vadd.f32 %v334, %v548
      %v550 = vpop.f32.mrb[0].mxu0
      %551 = vmatprep.mubr.f32.mxu0 0.0
      %552 = vmatmul.mubr.f32.gmra.mrb[0].mxu0 %v368
      %v553 = vpop.f32.mrb[0].mxu0
      %v554 = vadd.f32 %v334, %v553
      %v555 = vpop.f32.mrb[0].mxu0
      %556 = vmatprep.mubr.f32.mxu0 0.0
      %557 = vmatmul.mubr.f32.gmra.mrb[0].mxu0 %v371
      %v558 = vpop.f32.mrb[0].mxu0
      %v559 = vadd.f32 %v334, %v558
      %v560 = vpop.f32.mrb[0].mxu0
      %561 = vmatprep.mubr.f32.mxu0 0.0
      %562 = vmatmul.mubr.f32.gmra.mrb[0].mxu0 %v374
      %v563 = vpop.f32.mrb[0].mxu0
      %v564 = vadd.f32 %v334, %v563
      %v565 = vpop.f32.mrb[0].mxu0
      %566 = vmatprep.mubr.f32.mxu0 0.0
      %567 = vmatmul.mubr.f32.gmra.mrb[0].mxu0 %v377
      %v568 = vpop.f32.mrb[0].mxu0
      %v569 = vadd.f32 %v334, %v568
      %v570 = vpop.f32.mrb[0].mxu0
      %571 = vmatprep.mubr.f32.mxu0 0.0
      %572 = vmatmul.mubr.f32.gmra.mrb[0].mxu0 %v380
      %v573 = vpop.f32.mrb[0].mxu0
      %v574 = vadd.f32 %v334, %v573
      %v575 = vpop.f32.mrb[0].mxu0
      %576 = vmatprep.mubr.f32.mxu0 0.0
      %577 = vmatmul.mubr.f32.gmra.mrb[0].mxu0 %v383
      %v578 = vpop.f32.mrb[0].mxu0
      %v579 = vadd.f32 %v334, %v578
      %v580 = vpop.f32.mrb[0].mxu0
      %581 = vmatprep.mubr.f32.mxu0 0.0
      %582 = vmatmul.mubr.f32.gmra.mrb[0].mxu0 %v386
      %v583 = vpop.f32.mrb[0].mxu0
      %v584 = vadd.f32 %v334, %v583
      %v585 = vpop.f32.mrb[0].mxu0
      %586 = vmatprep.mubr.f32.mxu0 0.0
      %587 = vmatmul.mubr.f32.gmra.mrb[0].mxu0 %v389
      %v588 = vpop.f32.mrb[0].mxu0
      %v589 = vadd.f32 %v334, %v588
      %v590 = vpop.f32.mrb[0].mxu0
      %591 = vmatprep.mubr.f32.mxu0 0.0
      %592 = vmatmul.mubr.f32.gmra.mrb[0].mxu0 %v392
      %v593 = vpop.f32.mrb[0].mxu0
      %v594 = vadd.f32 %v334, %v593
      %v595 = vpop.f32.mrb[0].mxu0
      %596 = vmatprep.mubr.f32.mxu0 0.0
      %597 = vmatmul.mubr.f32.gmra.mrb[0].mxu0 %v395
      %v598 = vpop.f32.mrb[0].mxu0
      %v599 = vadd.f32 %v334, %v598
      %v600 = vpop.f32.mrb[0].mxu0
      %601 = vmatprep.mubr.f32.mxu0 0.0
      %602 = vmatmul.mubr.f32.gmra.mrb[0].mxu0 %v398
      %v603 = vpop.f32.mrb[0].mxu0
      %v604 = vadd.f32 %v334, %v603
      %v605 = vpop.f32.mrb[0].mxu0
      %606 = vmatprep.mubr.f32.mxu0 0.0
      %607 = vmatmul.mubr.f32.gmra.mrb[0].mxu0 %v401
      %v608 = vpop.f32.mrb[0].mxu0
      %v609 = vadd.f32 %v334, %v608
      %v610 = vpop.f32.mrb[0].mxu0
      %611 = vmatprep.mubr.f32.mxu0 0.0
      %612 = vmatmul.mubr.f32.gmra.mrb[0].mxu0 %v404
      %v613 = vpop.f32.mrb[0].mxu0
      %v614 = vadd.f32 %v334, %v613
      %v615 = vpop.f32.mrb[0].mxu0
      %616 = vmatprep.mubr.f32.mxu0 0.0
      %617 = vmatmul.mubr.f32.gmra.mrb[0].mxu0 %v407
      %v618 = vpop.f32.mrb[0].mxu0
      %v619 = vadd.f32 %v334, %v618
      %v620 = vpop.f32.mrb[0].mxu0
      %621 = vmatprep.mubr.f32.mxu0 0.0
      %622 = vmatmul.mubr.f32.gmra.mrb[0].mxu0 %v410
      %v623 = vpop.f32.mrb[0].mxu0
      %v624 = vadd.f32 %v334, %v623
      %v625 = vpop.f32.mrb[0].mxu0
      %626 = vmatprep.mubr.f32.mxu0 0.0
      %627 = vmatmul.mubr.f32.gmra.mrb[0].mxu0 %v413
      %v628 = vpop.f32.mrb[0].mxu0
      %v629 = vadd.f32 %v334, %v628
      %v630 = vpop.f32.mrb[0].mxu0
      %631 = vmatprep.mubr.f32.mxu0 0.0
      %632 = vmatmul.mubr.f32.gmra.mrb[0].mxu0 %v416
      %v633 = vpop.f32.mrb[0].mxu0
      %v634 = vadd.f32 %v334, %v633
      %v635 = vpop.f32.mrb[0].mxu0
      %636 = vmatprep.mubr.f32.mxu0 0.0
      %637 = vmatmul.mubr.f32.gmra.mrb[0].mxu0 %v419
      %v638 = vpop.f32.mrb[0].mxu0
      %v639 = vadd.f32 %v334, %v638
      %v640 = vpop.f32.mrb[0].mxu0
      %641 = vmatprep.mubr.f32.mxu0 0.0
      %642 = vmatmul.mubr.f32.gmra.mrb[0].mxu0 %v422
      %v643 = vpop.f32.mrb[0].mxu0
      %v644 = vadd.f32 %v334, %v643
      %v645 = vpop.f32.mrb[0].mxu0
      %646 = vmatprep.mubr.f32.mxu0 0.0
      %647 = vmatmul.mubr.f32.gmra.mrb[0].mxu0 %v425
      %v648 = vpop.f32.mrb[0].mxu0
      %v649 = vadd.f32 %v334, %v648
      %v650 = vpop.f32.mrb[0].mxu0
      %651 = vmatprep.mubr.f32.mxu0 0.0
      %652 = vmatmul.mubr.f32.gmra.mrb[0].mxu0 %v428
      %v653 = vpop.f32.mrb[0].mxu0
      %v654 = vadd.f32 %v334, %v653
      %v655 = vpop.f32.mrb[0].mxu0
      %656 = vmatprep.mubr.f32.mxu0 0.0
      %657 = vmatmul.mubr.f32.gmra.mrb[0].mxu0 %v431
      %v658 = vpop.f32.mrb[0].mxu0
      %v659 = vadd.f32 %v334, %v658
      %v660 = vpop.f32.mrb[0].mxu0
      %661 = vdwg.mxu0
      %v662 = vmax.f32 %v504, 0.0
      %v663 = vmax.f32 %v509, 0.0
      %v664 = vmax.f32 %v514, 0.0
      %v665 = vmax.f32 %v519, 0.0
      %v666 = vmax.f32 %v524, 0.0
      %v667 = vmax.f32 %v529, 0.0
      %v668 = vmax.f32 %v534, 0.0
      %v669 = vmax.f32 %v539, 0.0
      %v670 = vmax.f32 %v544, 0.0
      %v671 = vmax.f32 %v549, 0.0
      %v672 = vmax.f32 %v554, 0.0
      %v673 = vmax.f32 %v559, 0.0
      %v674 = vmax.f32 %v564, 0.0
      %v675 = vmax.f32 %v569, 0.0
      %v676 = vmax.f32 %v574, 0.0
      %v677 = vmax.f32 %v579, 0.0
      %v678 = vmax.f32 %v584, 0.0
      %v679 = vmax.f32 %v589, 0.0
      %v680 = vmax.f32 %v594, 0.0
      %v681 = vmax.f32 %v599, 0.0
      %v682 = vmax.f32 %v604, 0.0
      %v683 = vmax.f32 %v609, 0.0
      %v684 = vmax.f32 %v614, 0.0
      %v685 = vmax.f32 %v619, 0.0
      %v686 = vmax.f32 %v624, 0.0
      %v687 = vmax.f32 %v629, 0.0
      %v688 = vmax.f32 %v634, 0.0
      %v689 = vmax.f32 %v639, 0.0
      %v690 = vmax.f32 %v644, 0.0
      %v691 = vmax.f32 %v649, 0.0
      %v692 = vmax.f32 %v654, 0.0
      %v693 = vmax.f32 %v659, 0.0
      %v694 = vld [vmem:[%s279] sm:$0xff]
      %v695 = vld [vmem:[%s279 + $0x8] sm:$0xff]
      %v696 = vld [vmem:[%s279 + $0x10] sm:$0xff]
      %v697 = vld [vmem:[%s279 + $0x18] sm:$0xff]
      %v698 = vld [vmem:[%s279 + $0x20] sm:$0xff]
      %v699 = vld [vmem:[%s279 + $0x28] sm:$0xff]
      %v700 = vld [vmem:[%s279 + $0x30] sm:$0xff]
      %v701 = vld [vmem:[%s279 + $0x38] sm:$0xff]
      %v702 = vld [vmem:[%s279 + $0x40] sm:$0xff]
      %v703 = vld [vmem:[%s279 + $0x48] sm:$0xff]
      %v704 = vld [vmem:[%s279 + $0x50] sm:$0xff]
      %v705 = vld [vmem:[%s279 + $0x58] sm:$0xff]
      %v706 = vld [vmem:[%s279 + $0x60] sm:$0xff]
      %v707 = vld [vmem:[%s279 + $0x68] sm:$0xff]
      %v708 = vld [vmem:[%s279 + $0x70] sm:$0xff]
      %v709 = vld [vmem:[%s279 + $0x78] sm:$0xff]
      %v710 = vld [vmem:[%s279 + $0x80] sm:$0xff]
      %v711 = vld [vmem:[%s279 + $0x88] sm:$0xff]
      %v712 = vld [vmem:[%s279 + $0x90] sm:$0xff]
      %v713 = vld [vmem:[%s279 + $0x98] sm:$0xff]
      %v714 = vld [vmem:[%s279 + $0xa0] sm:$0xff]
      %v715 = vld [vmem:[%s279 + $0xa8] sm:$0xff]
      %v716 = vld [vmem:[%s279 + $0xb0] sm:$0xff]
      %v717 = vld [vmem:[%s279 + $0xb8] sm:$0xff]
      %v718 = vld [vmem:[%s279 + $0xc0] sm:$0xff]
      %v719 = vld [vmem:[%s279 + $0xc8] sm:$0xff]
      %v720 = vld [vmem:[%s279 + $0xd0] sm:$0xff]
      %v721 = vld [vmem:[%s279 + $0xd8] sm:$0xff]
      %v722 = vld [vmem:[%s279 + $0xe0] sm:$0xff]
      %v723 = vld [vmem:[%s279 + $0xe8] sm:$0xff]
      %v724 = vld [vmem:[%s279 + $0xf0] sm:$0xff]
      %v725 = vld [vmem:[%s279 + $0xf8] sm:$0xff]
      %v727 = vsel %vm336, %v694, 0
      %v730 = vsel %vm336, %v695, 0
      %v733 = vsel %vm336, %v696, 0
      %v736 = vsel %vm336, %v697, 0
      %v739 = vsel %vm336, %v698, 0
      %v742 = vsel %vm336, %v699, 0
      %v745 = vsel %vm336, %v700, 0
      %v748 = vsel %vm336, %v701, 0
      %v751 = vsel %vm336, %v702, 0
      %v754 = vsel %vm336, %v703, 0
      %v757 = vsel %vm336, %v704, 0
      %v760 = vsel %vm336, %v705, 0
      %v763 = vsel %vm336, %v706, 0
      %v766 = vsel %vm336, %v707, 0
      %v769 = vsel %vm336, %v708, 0
      %v772 = vsel %vm336, %v709, 0
      %v775 = vsel %vm336, %v710, 0
      %v778 = vsel %vm336, %v711, 0
      %v781 = vsel %vm336, %v712, 0
      %v784 = vsel %vm336, %v713, 0
      %v787 = vsel %vm336, %v714, 0
      %v790 = vsel %vm336, %v715, 0
      %v793 = vsel %vm336, %v716, 0
      %v796 = vsel %vm336, %v717, 0
      %v799 = vsel %vm336, %v718, 0
      %v802 = vsel %vm336, %v719, 0
      %v805 = vsel %vm336, %v720, 0
      %v808 = vsel %vm336, %v721, 0
      %v811 = vsel %vm336, %v722, 0
      %v814 = vsel %vm336, %v723, 0
      %v817 = vsel %vm336, %v724, 0
      %v820 = vsel %vm336, %v725, 0
      %822 = vmatprep.subr.mxu0 0.0
      %823 = vmatpush1.msra.mxu0 %v293
      %824 = vmatprep.subr.mxu0 0.0
      %825 = vmatpush1.msra.mxu0 %v294
      %826 = vmatprep.subr.mxu0 0.0
      %827 = vmatpush1.msra.mxu0 %v295
      %828 = vmatprep.subr.mxu0 0.0
      %829 = vmatpush1.msra.mxu0 %v435
      %830 = vmatprep.subr.mxu0 0.0
      %831 = vmatpush1.msra.mxu0 0.0
      %832 = vmatprep.subr.mxu0 0.0
      %833 = vmatpush1.msra.mxu0 0.0
      %834 = vmatprep.subr.mxu0 0.0
      %835 = vmatpush1.msra.mxu0 0.0
      %836 = vmatprep.subr.mxu0 0.0
      %837 = vmatpush1.msra.mxu0 0.0
      %838 = vmatprep.subr.mxu0 0.0
      %839 = vmatpush1.msra.mxu0 0.0
      %840 = vmatprep.subr.mxu0 0.0
      %841 = vmatpush1.msra.mxu0 0.0
      %842 = vmatprep.subr.mxu0 0.0
      %843 = vmatpush1.msra.mxu0 0.0
      %844 = vmatprep.subr.mxu0 0.0
      %845 = vmatpush1.msra.mxu0 0.0
      %846 = vmatprep.subr.mxu0 0.0
      %847 = vmatpush1.msra.mxu0 0.0
      %848 = vmatprep.subr.mxu0 0.0
      %849 = vmatpush1.msra.mxu0 0.0
      %850 = vmatprep.subr.mxu0 0.0
      %851 = vmatpush1.msra.mxu0 0.0
      %852 = vmatprep.subr.mxu0 0.0
      %853 = vmatpush1.msra.mxu0 0.0
      %854 = vmatprep.subr.mxu0 0.0
      %855 = vmatpush1.msra.mxu0 0.0
      %856 = vmatprep.subr.mxu0 0.0
      %857 = vmatpush1.msra.mxu0 0.0
      %858 = vmatprep.subr.mxu0 0.0
      %859 = vmatpush1.msra.mxu0 0.0
      %860 = vmatprep.subr.mxu0 0.0
      %861 = vmatpush1.msra.mxu0 0.0
      %862 = vmatprep.subr.mxu0 0.0
      %863 = vmatpush1.msra.mxu0 0.0
      %864 = vmatprep.subr.mxu0 0.0
      %865 = vmatpush1.msra.mxu0 0.0
      %866 = vmatprep.subr.mxu0 0.0
      %867 = vmatpush1.msra.mxu0 0.0
      %868 = vmatprep.subr.mxu0 0.0
      %869 = vmatpush1.msra.mxu0 0.0
      %870 = vmatprep.subr.mxu0 0.0
      %871 = vmatpush1.msra.mxu0 0.0
      %872 = vmatprep.subr.mxu0 0.0
      %873 = vmatpush1.msra.mxu0 0.0
      %874 = vmatprep.subr.mxu0 0.0
      %875 = vmatpush1.msra.mxu0 0.0
      %876 = vmatprep.subr.mxu0 0.0
      %877 = vmatpush1.msra.mxu0 0.0
      %878 = vmatprep.subr.mxu0 0.0
      %879 = vmatpush1.msra.mxu0 0.0
      %880 = vmatprep.subr.mxu0 0.0
      %881 = vmatpush1.msra.mxu0 0.0
      %882 = vmatprep.subr.mxu0 0.0
      %883 = vmatpush1.msra.mxu0 0.0
      %884 = vmatprep.subr.mxu0 0.0
      %885 = vmatpush1.msra.mxu0 0.0
      %886 = vmatprep.mubr.f32.mxu0 0.0
      %887 = vmatmul.mubr.f32.gmra.mrb[0].mxu0 %v727
      %v888 = vpop.f32.mrb[0].mxu0
      %v889 = vadd.f32 %v334, %v888
      %v890 = vpop.f32.mrb[0].mxu0
      %891 = vmatprep.mubr.f32.mxu0 0.0
      %892 = vmatmul.mubr.f32.gmra.mrb[0].mxu0 %v730
      %v893 = vpop.f32.mrb[0].mxu0
      %v894 = vadd.f32 %v334, %v893
      %v895 = vpop.f32.mrb[0].mxu0
      %896 = vmatprep.mubr.f32.mxu0 0.0
      %897 = vmatmul.mubr.f32.gmra.mrb[0].mxu0 %v733
      %v898 = vpop.f32.mrb[0].mxu0
      %v899 = vadd.f32 %v334, %v898
      %v900 = vpop.f32.mrb[0].mxu0
      %901 = vmatprep.mubr.f32.mxu0 0.0
      %902 = vmatmul.mubr.f32.gmra.mrb[0].mxu0 %v736
      %v903 = vpop.f32.mrb[0].mxu0
      %v904 = vadd.f32 %v334, %v903
      %v905 = vpop.f32.mrb[0].mxu0
      %906 = vmatprep.mubr.f32.mxu0 0.0
      %907 = vmatmul.mubr.f32.gmra.mrb[0].mxu0 %v739
      %v908 = vpop.f32.mrb[0].mxu0
      %v909 = vadd.f32 %v334, %v908
      %v910 = vpop.f32.mrb[0].mxu0
      %911 = vmatprep.mubr.f32.mxu0 0.0
      %912 = vmatmul.mubr.f32.gmra.mrb[0].mxu0 %v742
      %v913 = vpop.f32.mrb[0].mxu0
      %v914 = vadd.f32 %v334, %v913
      %v915 = vpop.f32.mrb[0].mxu0
      %916 = vmatprep.mubr.f32.mxu0 0.0
      %917 = vmatmul.mubr.f32.gmra.mrb[0].mxu0 %v745
      %v918 = vpop.f32.mrb[0].mxu0
      %v919 = vadd.f32 %v334, %v918
      %v920 = vpop.f32.mrb[0].mxu0
      %921 = vmatprep.mubr.f32.mxu0 0.0
      %922 = vmatmul.mubr.f32.gmra.mrb[0].mxu0 %v748
      %v923 = vpop.f32.mrb[0].mxu0
      %v924 = vadd.f32 %v334, %v923
      %v925 = vpop.f32.mrb[0].mxu0
      %926 = vmatprep.mubr.f32.mxu0 0.0
      %927 = vmatmul.mubr.f32.gmra.mrb[0].mxu0 %v751
      %v928 = vpop.f32.mrb[0].mxu0
      %v929 = vadd.f32 %v334, %v928
      %v930 = vpop.f32.mrb[0].mxu0
      %931 = vmatprep.mubr.f32.mxu0 0.0
      %932 = vmatmul.mubr.f32.gmra.mrb[0].mxu0 %v754
      %v933 = vpop.f32.mrb[0].mxu0
      %v934 = vadd.f32 %v334, %v933
      %v935 = vpop.f32.mrb[0].mxu0
      %936 = vmatprep.mubr.f32.mxu0 0.0
      %937 = vmatmul.mubr.f32.gmra.mrb[0].mxu0 %v757
      %v938 = vpop.f32.mrb[0].mxu0
      %v939 = vadd.f32 %v334, %v938
      %v940 = vpop.f32.mrb[0].mxu0
      %941 = vmatprep.mubr.f32.mxu0 0.0
      %942 = vmatmul.mubr.f32.gmra.mrb[0].mxu0 %v760
      %v943 = vpop.f32.mrb[0].mxu0
      %v944 = vadd.f32 %v334, %v943
      %v945 = vpop.f32.mrb[0].mxu0
      %946 = vmatprep.mubr.f32.mxu0 0.0
      %947 = vmatmul.mubr.f32.gmra.mrb[0].mxu0 %v763
      %v948 = vpop.f32.mrb[0].mxu0
      %v949 = vadd.f32 %v334, %v948
      %v950 = vpop.f32.mrb[0].mxu0
      %951 = vmatprep.mubr.f32.mxu0 0.0
      %952 = vmatmul.mubr.f32.gmra.mrb[0].mxu0 %v766
      %v953 = vpop.f32.mrb[0].mxu0
      %v954 = vadd.f32 %v334, %v953
      %v955 = vpop.f32.mrb[0].mxu0
      %956 = vmatprep.mubr.f32.mxu0 0.0
      %957 = vmatmul.mubr.f32.gmra.mrb[0].mxu0 %v769
      %v958 = vpop.f32.mrb[0].mxu0
      %v959 = vadd.f32 %v334, %v958
      %v960 = vpop.f32.mrb[0].mxu0
      %961 = vmatprep.mubr.f32.mxu0 0.0
      %962 = vmatmul.mubr.f32.gmra.mrb[0].mxu0 %v772
      %v963 = vpop.f32.mrb[0].mxu0
      %v964 = vadd.f32 %v334, %v963
      %v965 = vpop.f32.mrb[0].mxu0
      %966 = vmatprep.mubr.f32.mxu0 0.0
      %967 = vmatmul.mubr.f32.gmra.mrb[0].mxu0 %v775
      %v968 = vpop.f32.mrb[0].mxu0
      %v969 = vadd.f32 %v334, %v968
      %v970 = vpop.f32.mrb[0].mxu0
      %971 = vmatprep.mubr.f32.mxu0 0.0
      %972 = vmatmul.mubr.f32.gmra.mrb[0].mxu0 %v778
      %v973 = vpop.f32.mrb[0].mxu0
      %v974 = vadd.f32 %v334, %v973
      %v975 = vpop.f32.mrb[0].mxu0
      %976 = vmatprep.mubr.f32.mxu0 0.0
      %977 = vmatmul.mubr.f32.gmra.mrb[0].mxu0 %v781
      %v978 = vpop.f32.mrb[0].mxu0
      %v979 = vadd.f32 %v334, %v978
      %v980 = vpop.f32.mrb[0].mxu0
      %981 = vmatprep.mubr.f32.mxu0 0.0
      %982 = vmatmul.mubr.f32.gmra.mrb[0].mxu0 %v784
      %v983 = vpop.f32.mrb[0].mxu0
      %v984 = vadd.f32 %v334, %v983
      %v985 = vpop.f32.mrb[0].mxu0
      %986 = vmatprep.mubr.f32.mxu0 0.0
      %987 = vmatmul.mubr.f32.gmra.mrb[0].mxu0 %v787
      %v988 = vpop.f32.mrb[0].mxu0
      %v989 = vadd.f32 %v334, %v988
      %v990 = vpop.f32.mrb[0].mxu0
      %991 = vmatprep.mubr.f32.mxu0 0.0
      %992 = vmatmul.mubr.f32.gmra.mrb[0].mxu0 %v790
      %v993 = vpop.f32.mrb[0].mxu0
      %v994 = vadd.f32 %v334, %v993
      %v995 = vpop.f32.mrb[0].mxu0
      %996 = vmatprep.mubr.f32.mxu0 0.0
      %997 = vmatmul.mubr.f32.gmra.mrb[0].mxu0 %v793
      %v998 = vpop.f32.mrb[0].mxu0
      %v999 = vadd.f32 %v334, %v998
      %v1000 = vpop.f32.mrb[0].mxu0
      %1001 = vmatprep.mubr.f32.mxu0 0.0
      %1002 = vmatmul.mubr.f32.gmra.mrb[0].mxu0 %v796
      %v1003 = vpop.f32.mrb[0].mxu0
      %v1004 = vadd.f32 %v334, %v1003
      %v1005 = vpop.f32.mrb[0].mxu0
      %1006 = vmatprep.mubr.f32.mxu0 0.0
      %1007 = vmatmul.mubr.f32.gmra.mrb[0].mxu0 %v799
      %v1008 = vpop.f32.mrb[0].mxu0
      %v1009 = vadd.f32 %v334, %v1008
      %v1010 = vpop.f32.mrb[0].mxu0
      %1011 = vmatprep.mubr.f32.mxu0 0.0
      %1012 = vmatmul.mubr.f32.gmra.mrb[0].mxu0 %v802
      %v1013 = vpop.f32.mrb[0].mxu0
      %v1014 = vadd.f32 %v334, %v1013
      %v1015 = vpop.f32.mrb[0].mxu0
      %1016 = vmatprep.mubr.f32.mxu0 0.0
      %1017 = vmatmul.mubr.f32.gmra.mrb[0].mxu0 %v805
      %v1018 = vpop.f32.mrb[0].mxu0
      %v1019 = vadd.f32 %v334, %v1018
      %v1020 = vpop.f32.mrb[0].mxu0
      %1021 = vmatprep.mubr.f32.mxu0 0.0
      %1022 = vmatmul.mubr.f32.gmra.mrb[0].mxu0 %v808
      %v1023 = vpop.f32.mrb[0].mxu0
      %v1024 = vadd.f32 %v334, %v1023
      %v1025 = vpop.f32.mrb[0].mxu0
      %1026 = vmatprep.mubr.f32.mxu0 0.0
      %1027 = vmatmul.mubr.f32.gmra.mrb[0].mxu0 %v811
      %v1028 = vpop.f32.mrb[0].mxu0
      %v1029 = vadd.f32 %v334, %v1028
      %v1030 = vpop.f32.mrb[0].mxu0
      %1031 = vmatprep.mubr.f32.mxu0 0.0
      %1032 = vmatmul.mubr.f32.gmra.mrb[0].mxu0 %v814
      %v1033 = vpop.f32.mrb[0].mxu0
      %v1034 = vadd.f32 %v334, %v1033
      %v1035 = vpop.f32.mrb[0].mxu0
      %1036 = vmatprep.mubr.f32.mxu0 0.0
      %1037 = vmatmul.mubr.f32.gmra.mrb[0].mxu0 %v817
      %v1038 = vpop.f32.mrb[0].mxu0
      %v1039 = vadd.f32 %v334, %v1038
      %v1040 = vpop.f32.mrb[0].mxu0
      %1041 = vmatprep.mubr.f32.mxu0 0.0
      %1042 = vmatmul.mubr.f32.gmra.mrb[0].mxu0 %v820
      %v1043 = vpop.f32.mrb[0].mxu0
      %v1044 = vadd.f32 %v334, %v1043
      %v1045 = vpop.f32.mrb[0].mxu0
      %1046 = vdwg.mxu0
      %v1047 = vmax.f32 %v889, 0.0
      %v1048 = vmax.f32 %v894, 0.0
      %v1049 = vmax.f32 %v899, 0.0
      %v1050 = vmax.f32 %v904, 0.0
      %v1051 = vmax.f32 %v909, 0.0
      %v1052 = vmax.f32 %v914, 0.0
      %v1053 = vmax.f32 %v919, 0.0
      %v1054 = vmax.f32 %v924, 0.0
      %v1055 = vmax.f32 %v929, 0.0
      %v1056 = vmax.f32 %v934, 0.0
      %v1057 = vmax.f32 %v939, 0.0
      %v1058 = vmax.f32 %v944, 0.0
      %v1059 = vmax.f32 %v949, 0.0
      %v1060 = vmax.f32 %v954, 0.0
      %v1061 = vmax.f32 %v959, 0.0
      %v1062 = vmax.f32 %v964, 0.0
      %v1063 = vmax.f32 %v969, 0.0
      %v1064 = vmax.f32 %v974, 0.0
      %v1065 = vmax.f32 %v979, 0.0
      %v1066 = vmax.f32 %v984, 0.0
      %v1067 = vmax.f32 %v989, 0.0
      %v1068 = vmax.f32 %v994, 0.0
      %v1069 = vmax.f32 %v999, 0.0
      %v1070 = vmax.f32 %v1004, 0.0
      %v1071 = vmax.f32 %v1009, 0.0
      %v1072 = vmax.f32 %v1014, 0.0
      %v1073 = vmax.f32 %v1019, 0.0
      %v1074 = vmax.f32 %v1024, 0.0
      %v1075 = vmax.f32 %v1029, 0.0
      %v1076 = vmax.f32 %v1034, 0.0
      %v1077 = vmax.f32 %v1039, 0.0
      %v1078 = vmax.f32 %v1044, 0.0
      %vm1079 = vcmask 523264
      %1080 = vst.msk [vmem:[%s284] sm:$0xff] %vm1079, %v662
      %1081 = vst.msk [vmem:[%s284 + $0x8] sm:$0xff] %vm1079, %v663
      %1082 = vst.msk [vmem:[%s284 + $0x10] sm:$0xff] %vm1079, %v664
      %1083 = vst.msk [vmem:[%s284 + $0x18] sm:$0xff] %vm1079, %v665
      %1084 = vst.msk [vmem:[%s284 + $0x20] sm:$0xff] %vm1079, %v666
      %1085 = vst.msk [vmem:[%s284 + $0x28] sm:$0xff] %vm1079, %v667
      %1086 = vst.msk [vmem:[%s284 + $0x30] sm:$0xff] %vm1079, %v668
      %1087 = vst.msk [vmem:[%s284 + $0x38] sm:$0xff] %vm1079, %v669
      %1088 = vst.msk [vmem:[%s284 + $0x40] sm:$0xff] %vm1079, %v670
      %1089 = vst.msk [vmem:[%s284 + $0x48] sm:$0xff] %vm1079, %v671
      %1090 = vst.msk [vmem:[%s284 + $0x50] sm:$0xff] %vm1079, %v672
      %1091 = vst.msk [vmem:[%s284 + $0x58] sm:$0xff] %vm1079, %v673
      %1092 = vst.msk [vmem:[%s284 + $0x60] sm:$0xff] %vm1079, %v674
      %1093 = vst.msk [vmem:[%s284 + $0x68] sm:$0xff] %vm1079, %v675
      %1094 = vst.msk [vmem:[%s284 + $0x70] sm:$0xff] %vm1079, %v676
      %1095 = vst.msk [vmem:[%s284 + $0x78] sm:$0xff] %vm1079, %v677
      %1096 = vst.msk [vmem:[%s284 + $0x80] sm:$0xff] %vm1079, %v678
      %1097 = vst.msk [vmem:[%s284 + $0x88] sm:$0xff] %vm1079, %v679
      %1098 = vst.msk [vmem:[%s284 + $0x90] sm:$0xff] %vm1079, %v680
      %1099 = vst.msk [vmem:[%s284 + $0x98] sm:$0xff] %vm1079, %v681
      %1100 = vst.msk [vmem:[%s284 + $0xa0] sm:$0xff] %vm1079, %v682
      %1101 = vst.msk [vmem:[%s284 + $0xa8] sm:$0xff] %vm1079, %v683
      %1102 = vst.msk [vmem:[%s284 + $0xb0] sm:$0xff] %vm1079, %v684
      %1103 = vst.msk [vmem:[%s284 + $0xb8] sm:$0xff] %vm1079, %v685
      %1104 = vst.msk [vmem:[%s284 + $0xc0] sm:$0xff] %vm1079, %v686
      %1105 = vst.msk [vmem:[%s284 + $0xc8] sm:$0xff] %vm1079, %v687
      %1106 = vst.msk [vmem:[%s284 + $0xd0] sm:$0xff] %vm1079, %v688
      %1107 = vst.msk [vmem:[%s284 + $0xd8] sm:$0xff] %vm1079, %v689
      %1108 = vst.msk [vmem:[%s284 + $0xe0] sm:$0xff] %vm1079, %v690
      %1109 = vst.msk [vmem:[%s284 + $0xe8] sm:$0xff] %vm1079, %v691
      %1110 = vst.msk [vmem:[%s284 + $0xf0] sm:$0xff] %vm1079, %v692
      %1111 = vst.msk [vmem:[%s284 + $0xf8] sm:$0xff] %vm1079, %v693
      %1112 = vst.msk [vmem:[%s289] sm:$0xff] %vm1079, %v1047
      %1113 = vst.msk [vmem:[%s289 + $0x8] sm:$0xff] %vm1079, %v1048
      %1114 = vst.msk [vmem:[%s289 + $0x10] sm:$0xff] %vm1079, %v1049
      %1115 = vst.msk [vmem:[%s289 + $0x18] sm:$0xff] %vm1079, %v1050
      %1116 = vst.msk [vmem:[%s289 + $0x20] sm:$0xff] %vm1079, %v1051
      %1117 = vst.msk [vmem:[%s289 + $0x28] sm:$0xff] %vm1079, %v1052
      %1118 = vst.msk [vmem:[%s289 + $0x30] sm:$0xff] %vm1079, %v1053
      %1119 = vst.msk [vmem:[%s289 + $0x38] sm:$0xff] %vm1079, %v1054
      %1120 = vst.msk [vmem:[%s289 + $0x40] sm:$0xff] %vm1079, %v1055
      %1121 = vst.msk [vmem:[%s289 + $0x48] sm:$0xff] %vm1079, %v1056
      %1122 = vst.msk [vmem:[%s289 + $0x50] sm:$0xff] %vm1079, %v1057
      %1123 = vst.msk [vmem:[%s289 + $0x58] sm:$0xff] %vm1079, %v1058
      %1124 = vst.msk [vmem:[%s289 + $0x60] sm:$0xff] %vm1079, %v1059
      %1125 = vst.msk [vmem:[%s289 + $0x68] sm:$0xff] %vm1079, %v1060
      %1126 = vst.msk [vmem:[%s289 + $0x70] sm:$0xff] %vm1079, %v1061
      %1127 = vst.msk [vmem:[%s289 + $0x78] sm:$0xff] %vm1079, %v1062
      %1128 = vst.msk [vmem:[%s289 + $0x80] sm:$0xff] %vm1079, %v1063
      %1129 = vst.msk [vmem:[%s289 + $0x88] sm:$0xff] %vm1079, %v1064
      %1130 = vst.msk [vmem:[%s289 + $0x90] sm:$0xff] %vm1079, %v1065
      %1131 = vst.msk [vmem:[%s289 + $0x98] sm:$0xff] %vm1079, %v1066
      %1132 = vst.msk [vmem:[%s289 + $0xa0] sm:$0xff] %vm1079, %v1067
      %1133 = vst.msk [vmem:[%s289 + $0xa8] sm:$0xff] %vm1079, %v1068
      %1134 = vst.msk [vmem:[%s289 + $0xb0] sm:$0xff] %vm1079, %v1069
      %1135 = vst.msk [vmem:[%s289 + $0xb8] sm:$0xff] %vm1079, %v1070
      %1136 = vst.msk [vmem:[%s289 + $0xc0] sm:$0xff] %vm1079, %v1071
      %1137 = vst.msk [vmem:[%s289 + $0xc8] sm:$0xff] %vm1079, %v1072
      %1138 = vst.msk [vmem:[%s289 + $0xd0] sm:$0xff] %vm1079, %v1073
      %1139 = vst.msk [vmem:[%s289 + $0xd8] sm:$0xff] %vm1079, %v1074
      %1140 = vst.msk [vmem:[%s289 + $0xe0] sm:$0xff] %vm1079, %v1075
      %1141 = vst.msk [vmem:[%s289 + $0xe8] sm:$0xff] %vm1079, %v1076
      %1142 = vst.msk [vmem:[%s289 + $0xf0] sm:$0xff] %vm1079, %v1077
      %1143 = vst.msk [vmem:[%s289 + $0xf8] sm:$0xff] %vm1079, %v1078
      %v1144 = vsub.f32 %v662, %v1047
      %v1145 = vsub.f32 %v663, %v1048
      %v1146 = vsub.f32 %v664, %v1049
      %v1147 = vsub.f32 %v665, %v1050
      %v1148 = vsub.f32 %v666, %v1051
      %v1149 = vsub.f32 %v667, %v1052
      %v1150 = vsub.f32 %v668, %v1053
      %v1151 = vsub.f32 %v669, %v1054
      %v1152 = vsub.f32 %v670, %v1055
      %v1153 = vsub.f32 %v671, %v1056
      %v1154 = vsub.f32 %v672, %v1057
      %v1155 = vsub.f32 %v673, %v1058
      %v1156 = vsub.f32 %v674, %v1059
      %v1157 = vsub.f32 %v675, %v1060
      %v1158 = vsub.f32 %v676, %v1061
      %v1159 = vsub.f32 %v677, %v1062
      %v1160 = vsub.f32 %v678, %v1063
      %v1161 = vsub.f32 %v679, %v1064
      %v1162 = vsub.f32 %v680, %v1065
      %v1163 = vsub.f32 %v681, %v1066
      %v1164 = vsub.f32 %v682, %v1067
      %v1165 = vsub.f32 %v683, %v1068
      %v1166 = vsub.f32 %v684, %v1069
      %v1167 = vsub.f32 %v685, %v1070
      %v1168 = vsub.f32 %v686, %v1071
      %v1169 = vsub.f32 %v687, %v1072
      %v1170 = vsub.f32 %v688, %v1073
      %v1171 = vsub.f32 %v689, %v1074
      %v1172 = vsub.f32 %v690, %v1075
      %v1173 = vsub.f32 %v691, %v1076
      %v1174 = vsub.f32 %v692, %v1077
      %v1175 = vsub.f32 %v693, %v1078
      %v1176 = vmul.f32 %v1144, %v1144
      %v1177 = vmul.f32 %v1145, %v1145
      %v1178 = vmul.f32 %v1146, %v1146
      %v1179 = vmul.f32 %v1147, %v1147
      %v1180 = vmul.f32 %v1148, %v1148
      %v1181 = vmul.f32 %v1149, %v1149
      %v1182 = vmul.f32 %v1150, %v1150
      %v1183 = vmul.f32 %v1151, %v1151
      %v1184 = vmul.f32 %v1152, %v1152
      %v1185 = vmul.f32 %v1153, %v1153
      %v1186 = vmul.f32 %v1154, %v1154
      %v1187 = vmul.f32 %v1155, %v1155
      %v1188 = vmul.f32 %v1156, %v1156
      %v1189 = vmul.f32 %v1157, %v1157
      %v1190 = vmul.f32 %v1158, %v1158
      %v1191 = vmul.f32 %v1159, %v1159
      %v1192 = vmul.f32 %v1160, %v1160
      %v1193 = vmul.f32 %v1161, %v1161
      %v1194 = vmul.f32 %v1162, %v1162
      %v1195 = vmul.f32 %v1163, %v1163
      %v1196 = vmul.f32 %v1164, %v1164
      %v1197 = vmul.f32 %v1165, %v1165
      %v1198 = vmul.f32 %v1166, %v1166
      %v1199 = vmul.f32 %v1167, %v1167
      %v1200 = vmul.f32 %v1168, %v1168
      %v1201 = vmul.f32 %v1169, %v1169
      %v1202 = vmul.f32 %v1170, %v1170
      %v1203 = vmul.f32 %v1171, %v1171
      %v1204 = vmul.f32 %v1172, %v1172
      %v1205 = vmul.f32 %v1173, %v1173
      %v1206 = vmul.f32 %v1174, %v1174
      %v1207 = vmul.f32 %v1175, %v1175
      %v1208 = vsel %vm1079, %v1176, 0.0
      %v1209 = vsel %vm1079, %v1177, 0.0
      %v1210 = vadd.f32 %v1208, %v1209
      %v1211 = vsel %vm1079, %v1178, 0.0
      %v1212 = vadd.f32 %v1210, %v1211
      %v1213 = vsel %vm1079, %v1179, 0.0
      %v1214 = vadd.f32 %v1212, %v1213
      %v1215 = vsel %vm1079, %v1180, 0.0
      %v1216 = vadd.f32 %v1214, %v1215
      %v1217 = vsel %vm1079, %v1181, 0.0
      %v1218 = vadd.f32 %v1216, %v1217
      %v1219 = vsel %vm1079, %v1182, 0.0
      %v1220 = vadd.f32 %v1218, %v1219
      %v1221 = vsel %vm1079, %v1183, 0.0
      %v1222 = vadd.f32 %v1220, %v1221
      %v1223 = vsel %vm1079, %v1184, 0.0
      %v1224 = vadd.f32 %v1222, %v1223
      %v1225 = vsel %vm1079, %v1185, 0.0
      %v1226 = vadd.f32 %v1224, %v1225
      %v1227 = vsel %vm1079, %v1186, 0.0
      %v1228 = vadd.f32 %v1226, %v1227
      %v1229 = vsel %vm1079, %v1187, 0.0
      %v1230 = vadd.f32 %v1228, %v1229
      %v1231 = vsel %vm1079, %v1188, 0.0
      %v1232 = vadd.f32 %v1230, %v1231
      %v1233 = vsel %vm1079, %v1189, 0.0
      %v1234 = vadd.f32 %v1232, %v1233
      %v1235 = vsel %vm1079, %v1190, 0.0
      %v1236 = vadd.f32 %v1234, %v1235
      %v1237 = vsel %vm1079, %v1191, 0.0
      %v1238 = vadd.f32 %v1236, %v1237
      %v1239 = vsel %vm1079, %v1192, 0.0
      %v1240 = vadd.f32 %v1238, %v1239
      %v1241 = vsel %vm1079, %v1193, 0.0
      %v1242 = vadd.f32 %v1240, %v1241
      %v1243 = vsel %vm1079, %v1194, 0.0
      %v1244 = vadd.f32 %v1242, %v1243
      %v1245 = vsel %vm1079, %v1195, 0.0
      %v1246 = vadd.f32 %v1244, %v1245
      %v1247 = vsel %vm1079, %v1196, 0.0
      %v1248 = vadd.f32 %v1246, %v1247
      %v1249 = vsel %vm1079, %v1197, 0.0
      %v1250 = vadd.f32 %v1248, %v1249
      %v1251 = vsel %vm1079, %v1198, 0.0
      %v1252 = vadd.f32 %v1250, %v1251
      %v1253 = vsel %vm1079, %v1199, 0.0
      %v1254 = vadd.f32 %v1252, %v1253
      %v1255 = vsel %vm1079, %v1200, 0.0
      %v1256 = vadd.f32 %v1254, %v1255
      %v1257 = vsel %vm1079, %v1201, 0.0
      %v1258 = vadd.f32 %v1256, %v1257
      %v1259 = vsel %vm1079, %v1202, 0.0
      %v1260 = vadd.f32 %v1258, %v1259
      %v1261 = vsel %vm1079, %v1203, 0.0
      %v1262 = vadd.f32 %v1260, %v1261
      %v1263 = vsel %vm1079, %v1204, 0.0
      %v1264 = vadd.f32 %v1262, %v1263
      %v1265 = vsel %vm1079, %v1205, 0.0
      %v1266 = vadd.f32 %v1264, %v1265
      %v1267 = vsel %vm1079, %v1206, 0.0
      %v1268 = vadd.f32 %v1266, %v1267
      %v1269 = vsel %vm1079, %v1207, 0.0
      %v1270 = vadd.f32 %v1268, %v1269
      %1271 = vadd.xlane.f32.xlu0 %v1270
      %v1272 = vpop.xlane.xlu0 %1271
      %v1273 = vrot.slane %v1272, 4
      %v1274 = vadd.f32 %v1272, %v1273
      %v1275 = vrot.slane %v1274, 2
      %v1276 = vadd.f32 %v1274, %v1275
      %v1277 = vrot.slane %v1276, 1
      %v1278 = vadd.f32 %v1276, %v1277
      %s1279 = vtos %v1278
      %v1280 = vstv %s1279
      %v1281 = vadd.f32 %v1280, 0.0
      %vm1282 = vcmask 0
      %1283 = vst.msk [vmem:[%s292] sm:$0x1] %vm1282, %v1281
      %p1284 = scmp.lt.s32.totalorder %s18, 1
      %s1285 = scalar_select %p1284, %s18, 1
      %s1286 = smul.addr %s1285, 32
      %s1287 = smul.addr %s1286, 8
      %s1288 = scalar_lea.vmem %s4, %s1287
      %p1289 = scmp.lt.s32.totalorder %s18, 1
      %s1290 = scalar_select %p1289, %s18, 1
      %s1291 = smul.addr %s1290, 32
      %s1292 = smul.addr %s1291, 8
      %s1293 = scalar_lea.vmem %s5, %s1292
      %p1294 = scmp.lt.s32.totalorder %s18, 1
      %s1295 = scalar_select %p1294, %s18, 1
      %s1296 = scalar_lea.vmem %s6, %s1295
      // Predicated region
      $region37: #{tpu_custom_call.1} parent=35 // pred_check
        %p1297 = pneg %p130
      $region38: #{tpu_custom_call.1} parent=35 // pred_check_branch
        %1299 = sbr.rel (%p1297) target = $region40
      $region39: #{tpu_custom_call.1} parent=35 // pred_region
        _
      $region40: #{tpu_custom_call.1} parent=35 // pred_fallthru
        _
      // Predicated region
      $region41: #{tpu_custom_call.1} parent=35 // pred_check
        %p1300 = pneg %p156
      $region42: #{tpu_custom_call.1} parent=35 // pred_check_branch
        %1302 = sbr.rel (%p1300) target = $region44
      $region43: #{tpu_custom_call.1} parent=35 // pred_region
        _
      $region44: #{tpu_custom_call.1} parent=35 // pred_fallthru
        _
      // Predicated region
      $region45: #{tpu_custom_call.1} parent=35 // pred_check
        %p1303 = pneg %p182
      $region46: #{tpu_custom_call.1} parent=35 // pred_check_branch
        %1305 = sbr.rel (%p1303) target = $region48
      $region47: #{tpu_custom_call.1} parent=35 // pred_region
        _
      $region48: #{tpu_custom_call.1} parent=35 // pred_fallthru
        _
    $region36: #{tpu_custom_call.1} parent=5 // pred_fallthru
      _
    %p1306 = scmp.le.s32.totalorder 2, %s13
    // Predicated region
    $region49: #{tpu_custom_call.1} parent=5 // pred_check
      %p1307 = pneg %p1306
    $region50: #{tpu_custom_call.1} parent=5 // pred_check_branch
      %1309 = sbr.rel (%p1307) target = $region52
    $region51: #{tpu_custom_call.1} parent=5 // pred_region
      %s1310 = ssub.s32 %s13, 2
      // Predicated region
      $region53: #{tpu_custom_call.1} parent=51 // pred_check
        %p1311 = pneg %p136
      $region54: #{tpu_custom_call.1} parent=51 // pred_check_branch
        %1313 = sbr.rel (%p1311) target = $region56
      $region55: #{tpu_custom_call.1} parent=51 // pred_region
        %p1314 = scmp.lt.s32.totalorder %s19, 1
        %s1315 = scalar_select %p1314, %s19, 1
        %s1316 = smul.addr %s1315, 32
        %s1317 = smul.addr %s1316, 8
        %s1318 = scalar_lea.vmem %s4, %s1317
      $region56: #{tpu_custom_call.1} parent=51 // pred_fallthru
        _
      // Predicated region
      $region57: #{tpu_custom_call.1} parent=51 // pred_check
        %p1319 = pneg %p162
      $region58: #{tpu_custom_call.1} parent=51 // pred_check_branch
        %1321 = sbr.rel (%p1319) target = $region60
      $region59: #{tpu_custom_call.1} parent=51 // pred_region
        %p1322 = scmp.lt.s32.totalorder %s19, 1
        %s1323 = scalar_select %p1322, %s19, 1
        %s1324 = smul.addr %s1323, 32
        %s1325 = smul.addr %s1324, 8
        %s1326 = scalar_lea.vmem %s5, %s1325
      $region60: #{tpu_custom_call.1} parent=51 // pred_fallthru
        _
      // Predicated region
      $region61: #{tpu_custom_call.1} parent=51 // pred_check
        %p1327 = pneg %p188
      $region62: #{tpu_custom_call.1} parent=51 // pred_check_branch
        %1329 = sbr.rel (%p1327) target = $region64
      $region63: #{tpu_custom_call.1} parent=51 // pred_region
        %p1330 = scmp.lt.s32.totalorder %s19, 1
        %s1331 = scalar_select %p1330, %s19, 1
        %s1332 = scalar_lea.vmem %s6, %s1331
      $region64: #{tpu_custom_call.1} parent=51 // pred_fallthru
        _
    $region52: #{tpu_custom_call.1} parent=5 // pred_fallthru
      _
  $region6: #{tpu_custom_call.1} parent=0 // loop_footer
    %s17 = sadd.s32 1, %s13
  $region7: #{tpu_custom_call.1} parent=0 // loop_footer_branch
    %12 = sbr.rel target = $region3
  $region8: #{tpu_custom_call.1} parent=0 // loop_exit
    _

</llo_original>
